<compile_context>
chip_gen: v7x
topology: tpu7x:2x2x1
jax: 0.10.0
libtpu: 0.0.40
codegen_flags: <defaults>
</compile_context>

<pallas_src>
import jax
import jax.numpy as jnp
from jax.experimental import pallas as pl
from jax.experimental.pallas import tpu as pltpu


# ----------------------------------------------------------------------------
# Fused bidirectional GRU recurrence kernel.
# x_proj already contains: [W_ir x + b_ir + b_hr | W_iz x + b_iz + b_hz | W_in x + b_in]
# Per step:
#   hp = h @ W_hh_all                  (single (H,3H) MXU matmul)
#   r  = sigmoid(xp_r + hp_r)
#   z  = sigmoid(xp_z + hp_z)
#   n  = tanh  (xp_n + r * (hp_n + b_hn))
#   h' = (1 - z) * n + z * h
# ----------------------------------------------------------------------------
def gru_kernel(xp_ref, wh_ref, bhn_ref, out_ref, h_ref):
    d = pl.program_id(0)          # direction: 0 = forward, 1 = backward
    t = pl.program_id(1)          # recurrence step
    T = pl.num_programs(1)
    H = h_ref.shape[-1]

    @pl.when(t == 0)
    def _():                      # fresh hidden state at the start of each direction
        h_ref[...] = jnp.zeros_like(h_ref)

    xp = xp_ref[0, 0]                                                   # (B_pad, 3H)
    h = h_ref[...]                                                      # (B_pad, H)
    hp = jnp.dot(h, wh_ref[0], preferred_element_type=jnp.float32)      # (B_pad, 3H)

    r = jax.nn.sigmoid(xp[:, 0:H] + hp[:, 0:H])
    z = jax.nn.sigmoid(xp[:, H:2 * H] + hp[:, H:2 * H])
    n = jnp.tanh(xp[:, 2 * H:3 * H] + r * (hp[:, 2 * H:3 * H] + bhn_ref[0]))

    h_new = (1.0 - z) * n + z * h
    h_ref[...] = h_new

    # Store into the VMEM-resident per-direction output block at the original
    # time position (reversed for the backward direction).
    time_idx = t + d * (T - 1 - 2 * t)          # t for fwd, T-1-t for bwd
    out_ref[0, pl.ds(time_idx, 1)] = h_new[None].astype(out_ref.dtype)


def run_bidirectional_gru(x_proj, w_h, b_hn, T, B_pad, H):
    """x_proj: (2, T, B_pad, 3H), w_h: (2, H, 3H), b_hn: (2, 1, H).
    Returns (2, T, B_pad, H) float32."""
    return pl.pallas_call(
        gru_kernel,
        out_shape=jax.ShapeDtypeStruct((2, T, B_pad, H), jnp.float32),
        grid_spec=pltpu.PrefetchScalarGridSpec(
            num_scalar_prefetch=0,
            grid=(2, T),
            in_specs=[
                # backward direction reads x_proj in reverse time order via index_map
                pl.BlockSpec((1, 1, B_pad, 3 * H),
                             lambda d, t: (d, t + d * (T - 1 - 2 * t), 0, 0)),
                pl.BlockSpec((1, H, 3 * H), lambda d, t: (d, 0, 0)),
                pl.BlockSpec((1, 1, H), lambda d, t: (d, 0, 0)),
            ],
            # Whole per-direction output slab stays resident in VMEM across the
            # time sweep -> one writeback per direction instead of T tiny DMAs.
            out_specs=pl.BlockSpec((1, T, B_pad, H), lambda d, t: (d, 0, 0, 0)),
            scratch_shapes=[pltpu.VMEM((B_pad, H), jnp.float32)],
        ),
        compiler_params=pltpu.CompilerParams(
            dimension_semantics=("parallel", "arbitrary")),
    )(x_proj, w_h, b_hn)


# ----------------------------------------------------------------------------
# LayerNormal: mean / unbiased std (ddof=1) clamped at esp, scale + shift.
# Row-tiled so VMEM stays bounded as B*T grows.
# ----------------------------------------------------------------------------
def layernormal(x2d, weight, bias, esp=1e-6):
    N, D = x2d.shape
    if N <= 1024:
        tr, n_pad = N, N                # single block == full array (always legal)
    else:
        tr = 512                        # multiple of 8 sublanes, full D lanes
        n_pad = pl.cdiv(N, tr) * tr
    x_in = x2d if n_pad == N else jnp.pad(x2d, ((0, n_pad - N), (0, 0)))

    def kernel(x_ref, w_ref, b_ref, o_ref):
        xv = x_ref[...].astype(jnp.float32)
        mu = jnp.mean(xv, axis=-1, keepdims=True)
        var = jnp.sum((xv - mu) ** 2, axis=-1, keepdims=True) * (1.0 / (D - 1))
        sigma = jnp.maximum(jnp.sqrt(var), esp)          # torch.std(...).clamp(min=esp)
        inv = pl.reciprocal(sigma, approx=True)          # EUP, frees VPU slots
        o_ref[...] = ((xv - mu) * inv * w_ref[...] + b_ref[...]).astype(o_ref.dtype)

    out = pl.pallas_call(
        kernel,
        out_shape=jax.ShapeDtypeStruct((n_pad, D), jnp.float32),
        grid=(n_pad // tr,),
        in_specs=[
            pl.BlockSpec((tr, D), lambda i: (i, 0)),
            pl.BlockSpec((1, D), lambda i: (0, 0)),
            pl.BlockSpec((1, D), lambda i: (0, 0)),
        ],
        out_specs=pl.BlockSpec((tr, D), lambda i: (i, 0)),
        compiler_params=pltpu.CompilerParams(dimension_semantics=("parallel",)),
    )(x_in, weight.reshape(1, D), bias.reshape(1, D))
    return out[:N]


# ----------------------------------------------------------------------------
# Full GRUModel forward (batch_first: x is (B, T, I), output is (B, T, 2H)).
# ----------------------------------------------------------------------------
@jax.jit
def gru_model_forward(x, params):
    B, T, I = x.shape
    H = params["w_hh_f"].shape[1]
    B_pad = ((B + 7) // 8) * 8          # fill the 8-sublane M dimension

    def fuse(wi, wh, bi, bh):
        # PyTorch layout: wi (3H, I), wh (3H, H), rows ordered [r, z, n].
        w_i = wi.T                                                    # (I, 3H)
        w_h = wh.T                                                    # (H, 3H)
        # Fold b_hr/b_hz into the x-projection bias; only b_hn stays separate
        # (it must be added before the r* multiply).
        b_x = jnp.concatenate([bi[0:H] + bh[0:H],
                               bi[H:2 * H] + bh[H:2 * H],
                               bi[2 * H:3 * H]])                      # (3H,)
        b_hn = bh[2 * H:3 * H]                                        # (H,)
        return w_i, w_h, b_x, b_hn

    wif, whf, bxf, bhnf = fuse(params["w_ih_f"], params["w_hh_f"],
                               params["b_ih_f"], params["b_hh_f"])
    wib, whb, bxb, bhnb = fuse(params["w_ih_b"], params["w_hh_b"],
                               params["b_ih_b"], params["b_hh_b"])

    w_i = jnp.stack([wif, wib])                       # (2, I, 3H)
    w_h = jnp.stack([whf, whb])                       # (2, H, 3H)
    b_x = jnp.stack([bxf, bxb])                       # (2, 3H)
    b_hn = jnp.stack([bhnf, bhnb]).reshape(2, 1, H)   # (2, 1, H)

    # Hoisted input projection: one large matmul for all timesteps & both
    # directions, laid out directly in the (2, T, B, 3H) order the kernel wants.
    x_proj = jnp.einsum("bti,dih->dtbh", x.astype(jnp.float32), w_i,
                        precision=jax.lax.Precision.HIGHEST) + b_x[:, None, None, :]
    x_proj = jnp.pad(x_proj, ((0, 0), (0, 0), (0, B_pad - B), (0, 0)))

    gru_out = run_bidirectional_gru(x_proj, w_h, b_hn, T, B_pad, H)   # (2, T, B_pad, H)

    out_f = gru_out[0, :, :B, :]                      # (T, B, H)
    out_b = gru_out[1, :, :B, :]                      # (T, B, H) already in original time order
    y = jnp.transpose(jnp.concatenate([out_f, out_b], axis=-1), (1, 0, 2))  # (B, T, 2H)

    ln = layernormal(y.reshape(B * T, 2 * H), params["ln_w"], params["ln_b"], esp=1e-6)
    return ln.reshape(B, T, 2 * H)


# ----------------------------------------------------------------------------
# Parameter init (PyTorch GRU default U(-1/sqrt(H), 1/sqrt(H)); LN ones/zeros).
# ----------------------------------------------------------------------------
def init_params(key, input_size, hidden_size):
    H, I = hidden_size, input_size
    k = 1.0 / jnp.sqrt(jnp.float32(H))
    keys = jax.random.split(key, 8)

    def u(kk, shape):
        return jax.random.uniform(kk, shape, jnp.float32, -k, k)

    return {
        "w_ih_f": u(keys[0], (3 * H, I)),
        "w_hh_f": u(keys[1], (3 * H, H)),
        "b_ih_f": u(keys[2], (3 * H,)),
        "b_hh_f": u(keys[3], (3 * H,)),
        "w_ih_b": u(keys[4], (3 * H, I)),
        "w_hh_b": u(keys[5], (3 * H, H)),
        "b_ih_b": u(keys[6], (3 * H,)),
        "b_hh_b": u(keys[7], (3 * H,)),
        "ln_w": jnp.ones((2 * H,), jnp.float32),
        "ln_b": jnp.zeros((2 * H,), jnp.float32),
    }


# ----------------------------------------------------------------------------
# Pure-JAX reference (matches the PyTorch module semantics) for verification.
# ----------------------------------------------------------------------------
def gru_ref_forward(x, params):
    B, T, I = x.shape
    H = params["w_hh_f"].shape[1]
    hp = jax.lax.Precision.HIGHEST

    def direction(wi, wh, bi, bh, xs_tbi):
        def step(h, xt):
            gi = jnp.dot(xt, wi.T, precision=hp) + bi
            gh = jnp.dot(h, wh.T, precision=hp) + bh
            r = jax.nn.sigmoid(gi[:, :H] + gh[:, :H])
            z = jax.nn.sigmoid(gi[:, H:2 * H] + gh[:, H:2 * H])
            n = jnp.tanh(gi[:, 2 * H:] + r * gh[:, 2 * H:])
            h_new = (1.0 - z) * n + z * h
            return h_new, h_new
        h0 = jnp.zeros((B, H), jnp.float32)
        _, ys = jax.lax.scan(step, h0, xs_tbi)
        return ys                                               # (T, B, H)

    x_tbi = jnp.transpose(x, (1, 0, 2))
    out_f = direction(params["w_ih_f"], params["w_hh_f"],
                      params["b_ih_f"], params["b_hh_f"], x_tbi)
    out_b = direction(params["w_ih_b"], params["w_hh_b"],
                      params["b_ih_b"], params["b_hh_b"], x_tbi[::-1])[::-1]
    y = jnp.transpose(jnp.concatenate([out_f, out_b], axis=-1), (1, 0, 2))  # (B, T, 2H)

    mu = jnp.mean(y, axis=-1, keepdims=True)
    sigma = jnp.maximum(jnp.std(y, axis=-1, keepdims=True, ddof=1), 1e-6)
    return (y - mu) / sigma * params["ln_w"] + params["ln_b"]


if __name__ == "__main__":
    # Small shapes consistent with GRUModel(input_size, hidden_size, 1, bidirectional=True)
    B, T, INPUT_SIZE, HIDDEN_SIZE = 2, 8, 48, 32

    root = jax.random.PRNGKey(0)
    k_params, k_x = jax.random.split(root)
    params = init_params(k_params, INPUT_SIZE, HIDDEN_SIZE)
    x = jax.random.normal(k_x, (B, T, INPUT_SIZE), jnp.float32)

    out = jax.block_until_ready(gru_model_forward(x, params))
    assert out.shape == (B, T, 2 * HIDDEN_SIZE), out.shape
    assert bool(jnp.all(jnp.isfinite(out)))

    ref = jax.block_until_ready(gru_ref_forward(x, params))
    max_err = float(jnp.max(jnp.abs(out - ref)))
    assert max_err < 1e-2, f"mismatch vs reference: max abs err = {max_err}"

    print("KERNEL_OK")
</pallas_src>

<mosaic_0001>
module attributes {stable_mosaic.version = 11 : i64} {
  func.func @gru_kernel(%arg0: i32, %arg1: i32, %arg2: memref<1x1x8x96xf32, #tpu.memory_space<vmem>>, %arg3: memref<1x32x96xf32, #tpu.memory_space<vmem>>, %arg4: memref<1x1x32xf32, #tpu.memory_space<vmem>>, %arg5: memref<1x8x8x32xf32, #tpu.memory_space<vmem>>, %arg6: memref<8x32xf32, #tpu.memory_space<vmem>>) attributes {dimension_semantics = [#tpu.dimension_semantics<parallel>, #tpu.dimension_semantics<arbitrary>], iteration_bounds = array<i64: 2, 8>, scalar_prefetch = 0 : i64, scratch_operands = 1 : i64, tpu.core_type = #tpu.core_type<tc>, window_params = [{transform_indices = @transform_0, window_bounds = array<i64: 1, 1, 8, 96>}, {transform_indices = @transform_1, window_bounds = array<i64: 1, 32, 96>}, {transform_indices = @transform_2, window_bounds = array<i64: 1, 1, 32>}, {transform_indices = @transform_3, window_bounds = array<i64: 1, 8, 8, 32>}]} {
    %c0_i32 = arith.constant 0 : i32
    %0 = arith.cmpi eq, %arg1, %c0_i32 : i32
    %1 = arith.extui %0 : i1 to i32
    %c0_i32_0 = arith.constant 0 : i32
    %2 = arith.cmpi ne, %1, %c0_i32_0 : i32
    scf.if %2 {
      %cst_20 = arith.constant 0.000000e+00 : f32
      %49 = vector.broadcast %cst_20 : f32 to vector<8x32xf32>
      %c0_21 = arith.constant 0 : index
      %c0_22 = arith.constant 0 : index
      %50 = vector.load %arg6[%c0_21, %c0_22] : memref<8x32xf32, #tpu.memory_space<vmem>>, vector<8x32xf32>
      tpu.vector_store %arg6[%c0_21, %c0_22], %49 {strides = array<i32>} : memref<8x32xf32, #tpu.memory_space<vmem>>, vector<8x32xf32>,
    } else {
    }
    %c0 = arith.constant 0 : index
    %c0_1 = arith.constant 0 : index
    %c0_2 = arith.constant 0 : index
    %c0_3 = arith.constant 0 : index
    %3 = vector.load %arg2[%c0, %c0_1, %c0_2, %c0_3] : memref<1x1x8x96xf32, #tpu.memory_space<vmem>>, vector<1x1x8x96xf32>
    %4 = vector.shape_cast %3 : vector<1x1x8x96xf32> to vector<8x96xf32>
    %c0_4 = arith.constant 0 : index
    %c0_5 = arith.constant 0 : index
    %5 = vector.load %arg6[%c0_4, %c0_5] : memref<8x32xf32, #tpu.memory_space<vmem>>, vector<8x32xf32>
    %c0_6 = arith.constant 0 : index
    %c0_7 = arith.constant 0 : index
    %c0_8 = arith.constant 0 : index
    %6 = vector.load %arg3[%c0_6, %c0_7, %c0_8] : memref<1x32x96xf32, #tpu.memory_space<vmem>>, vector<1x32x96xf32>
    %7 = vector.shape_cast %6 : vector<1x32x96xf32> to vector<32x96xf32>
    %cst = arith.constant dense<0.000000e+00> : vector<8x96xf32>
    %8 = tpu.matmul %5, %7, %cst {dimension_numbers = #tpu.dot_dimension_numbers<[1], [0], [0], [1], [0, 0, 1, 1], [], []>} : vector<8x32xf32>, vector<32x96xf32>, vector<8x96xf32> -> vector<8x96xf32>
    %9 = vector.extract_strided_slice %4 {offsets = [0, 0], sizes = [8, 32], strides = [1, 1]} : vector<8x96xf32> to vector<8x32xf32>
    %10 = vector.extract_strided_slice %8 {offsets = [0, 0], sizes = [8, 32], strides = [1, 1]} : vector<8x96xf32> to vector<8x32xf32>
    %11 = arith.addf %9, %10 : vector<8x32xf32>
    %12 = arith.negf %11 : vector<8x32xf32>
    %13 = math.exp %12 : vector<8x32xf32>
    %cst_9 = arith.constant 1.000000e+00 : f32
    %14 = vector.broadcast %cst_9 : f32 to vector<8x32xf32>
    %15 = arith.addf %14, %13 : vector<8x32xf32>
    %16 = arith.divf %14, %15 : vector<8x32xf32>
    %17 = vector.extract_strided_slice %4 {offsets = [0, 32], sizes = [8, 32], strides = [1, 1]} : vector<8x96xf32> to vector<8x32xf32>
    %18 = vector.extract_strided_slice %8 {offsets = [0, 32], sizes = [8, 32], strides = [1, 1]} : vector<8x96xf32> to vector<8x32xf32>
    %19 = arith.addf %17, %18 : vector<8x32xf32>
    %20 = arith.negf %19 : vector<8x32xf32>
    %21 = math.exp %20 : vector<8x32xf32>
    %cst_10 = arith.constant 1.000000e+00 : f32
    %22 = vector.broadcast %cst_10 : f32 to vector<8x32xf32>
    %23 = arith.addf %22, %21 : vector<8x32xf32>
    %24 = arith.divf %22, %23 : vector<8x32xf32>
    %25 = vector.extract_strided_slice %4 {offsets = [0, 64], sizes = [8, 32], strides = [1, 1]} : vector<8x96xf32> to vector<8x32xf32>
    %26 = vector.extract_strided_slice %8 {offsets = [0, 64], sizes = [8, 32], strides = [1, 1]} : vector<8x96xf32> to vector<8x32xf32>
    %c0_11 = arith.constant 0 : index
    %c0_12 = arith.constant 0 : index
    %c0_13 = arith.constant 0 : index
    %27 = vector.load %arg4[%c0_11, %c0_12, %c0_13] : memref<1x1x32xf32, #tpu.memory_space<vmem>>, vector<1x1x32xf32>
    %28 = vector.shape_cast %27 : vector<1x1x32xf32> to vector<1x32xf32>
    %29 = vector.broadcast %28 : vector<1x32xf32> to vector<8x32xf32>
    %30 = arith.addf %26, %29 : vector<8x32xf32>
    %31 = arith.mulf %16, %30 : vector<8x32xf32>
    %32 = arith.addf %25, %31 : vector<8x32xf32>
    %33 = math.tanh %32 : vector<8x32xf32>
    %cst_14 = arith.constant 1.000000e+00 : f32
    %34 = vector.broadcast %cst_14 : f32 to vector<8x32xf32>
    %35 = arith.subf %34, %24 : vector<8x32xf32>
    %36 = arith.mulf %35, %33 : vector<8x32xf32>
    %37 = arith.mulf %24, %5 : vector<8x32xf32>
    %38 = arith.addf %36, %37 : vector<8x32xf32>
    %c0_15 = arith.constant 0 : index
    %c0_16 = arith.constant 0 : index
    %39 = vector.load %arg6[%c0_15, %c0_16] : memref<8x32xf32, #tpu.memory_space<vmem>>, vector<8x32xf32>
    tpu.vector_store %arg6[%c0_15, %c0_16], %38 {strides = array<i32>} : memref<8x32xf32, #tpu.memory_space<vmem>>, vector<8x32xf32>,
    %c2_i32 = arith.constant 2 : i32
    %40 = arith.muli %c2_i32, %arg1 : i32
    %c7_i32 = arith.constant 7 : i32
    %41 = arith.subi %c7_i32, %40 : i32
    %42 = arith.muli %arg0, %41 : i32
    %43 = arith.addi %arg1, %42 : i32
    %44 = vector.shape_cast %38 : vector<8x32xf32> to vector<1x8x32xf32>
    %c0_17 = arith.constant 0 : index
    %45 = arith.index_cast %43 : i32 to index
    %c0_18 = arith.constant 0 : index
    %c0_19 = arith.constant 0 : index
    %46 = vector.load %arg5[%c0_17, %45, %c0_18, %c0_19] : memref<1x8x8x32xf32, #tpu.memory_space<vmem>>, vector<1x1x8x32xf32>
    %47 = vector.shape_cast %46 : vector<1x1x8x32xf32> to vector<1x8x32xf32>
    %48 = vector.shape_cast %44 : vector<1x8x32xf32> to vector<1x1x8x32xf32>
    tpu.vector_store %arg5[%c0_17, %45, %c0_18, %c0_19], %48 {strides = array<i32>} : memref<1x8x8x32xf32, #tpu.memory_space<vmem>>, vector<1x1x8x32xf32>,
    return
  }
  func.func @transform_0(%arg0: i32, %arg1: i32) -> (i32, i32, i32, i32) {
    %c2_i32 = arith.constant 2 : i32
    %0 = arith.muli %c2_i32, %arg1 : i32
    %c7_i32 = arith.constant 7 : i32
    %1 = arith.subi %c7_i32, %0 : i32
    %2 = arith.muli %arg0, %1 : i32
    %3 = arith.addi %arg1, %2 : i32
    %c0_i32 = arith.constant 0 : i32
    %c0_i32_0 = arith.constant 0 : i32
    %c0_i32_1 = arith.constant 0 : i32
    return %arg0, %3, %c0_i32, %c0_i32_0 : i32, i32, i32, i32
  }
  func.func @transform_1(%arg0: i32, %arg1: i32) -> (i32, i32, i32) {
    %c0_i32 = arith.constant 0 : i32
    %c0_i32_0 = arith.constant 0 : i32
    %c0_i32_1 = arith.constant 0 : i32
    return %arg0, %c0_i32, %c0_i32_0 : i32, i32, i32
  }
  func.func @transform_2(%arg0: i32, %arg1: i32) -> (i32, i32, i32) {
    %c0_i32 = arith.constant 0 : i32
    %c0_i32_0 = arith.constant 0 : i32
    %c0_i32_1 = arith.constant 0 : i32
    return %arg0, %c0_i32, %c0_i32_0 : i32, i32, i32
  }
  func.func @transform_3(%arg0: i32, %arg1: i32) -> (i32, i32, i32, i32) {
    %c0_i32 = arith.constant 0 : i32
    %c0_i32_0 = arith.constant 0 : i32
    %c0_i32_1 = arith.constant 0 : i32
    %c0_i32_2 = arith.constant 0 : i32
    return %arg0, %c0_i32, %c0_i32_0, %c0_i32_1 : i32, i32, i32, i32
  }
}

module attributes {stable_mosaic.version = 11 : i64} {
  func.func @kernel(%arg0: i32, %arg1: memref<16x64xf32, #tpu.memory_space<vmem>>, %arg2: memref<1x64xf32, #tpu.memory_space<vmem>>, %arg3: memref<1x64xf32, #tpu.memory_space<vmem>>, %arg4: memref<16x64xf32, #tpu.memory_space<vmem>>) attributes {dimension_semantics = [#tpu.dimension_semantics<parallel>], iteration_bounds = array<i64: 1>, scalar_prefetch = 0 : i64, scratch_operands = 0 : i64, tpu.core_type = #tpu.core_type<tc>, window_params = [{transform_indices = @transform_0, window_bounds = array<i64: 16, 64>}, {pipeline_mode = #tpu.pipeline_mode<synchronous>, transform_indices = @transform_1, window_bounds = array<i64: 1, 64>}, {pipeline_mode = #tpu.pipeline_mode<synchronous>, transform_indices = @transform_2, window_bounds = array<i64: 1, 64>}, {transform_indices = @transform_3, window_bounds = array<i64: 16, 64>}]} {
    %c0 = arith.constant 0 : index
    %c0_0 = arith.constant 0 : index
    %0 = vector.load %arg1[%c0, %c0_0] : memref<16x64xf32, #tpu.memory_space<vmem>>, vector<16x64xf32>
    %cst = arith.constant dense<0.000000e+00> : vector<16xf32>
    %1 = vector.multi_reduction <add>, %0, %cst [1] : vector<16x64xf32> to vector<16xf32>
    %2 = vector.shape_cast %1 : vector<16xf32> to vector<16x1xf32>
    %cst_1 = arith.constant 6.400000e+01 : f32
    %3 = vector.broadcast %cst_1 : f32 to vector<16x1xf32>
    %4 = arith.divf %2, %3 : vector<16x1xf32>
    %5 = vector.broadcast %4 : vector<16x1xf32> to vector<16x64xf32>
    %6 = arith.subf %0, %5 : vector<16x64xf32>
    %7 = arith.mulf %6, %6 : vector<16x64xf32>
    %cst_2 = arith.constant dense<0.000000e+00> : vector<16xf32>
    %8 = vector.multi_reduction <add>, %7, %cst_2 [1] : vector<16x64xf32> to vector<16xf32>
    %9 = vector.shape_cast %8 : vector<16xf32> to vector<16x1xf32>
    %cst_3 = arith.constant 0.0158730168 : f32
    %10 = vector.broadcast %cst_3 : f32 to vector<16x1xf32>
    %11 = arith.mulf %9, %10 : vector<16x1xf32>
    %12 = math.sqrt %11 : vector<16x1xf32>
    %cst_4 = arith.constant 9.99999997E-7 : f32
    %13 = vector.broadcast %cst_4 : f32 to vector<16x1xf32>
    %14 = arith.maximumf %12, %13 : vector<16x1xf32>
    %15 = tpu.reciprocal %14 {approx = true} : vector<16x1xf32> -> vector<16x1xf32>
    %16 = vector.broadcast %4 : vector<16x1xf32> to vector<16x64xf32>
    %17 = arith.subf %0, %16 : vector<16x64xf32>
    %18 = vector.broadcast %15 : vector<16x1xf32> to vector<16x64xf32>
    %19 = arith.mulf %17, %18 : vector<16x64xf32>
    %c0_5 = arith.constant 0 : index
    %c0_6 = arith.constant 0 : index
    %20 = vector.load %arg2[%c0_5, %c0_6] : memref<1x64xf32, #tpu.memory_space<vmem>>, vector<1x64xf32>
    %21 = vector.broadcast %20 : vector<1x64xf32> to vector<16x64xf32>
    %22 = arith.mulf %19, %21 : vector<16x64xf32>
    %c0_7 = arith.constant 0 : index
    %c0_8 = arith.constant 0 : index
    %23 = vector.load %arg3[%c0_7, %c0_8] : memref<1x64xf32, #tpu.memory_space<vmem>>, vector<1x64xf32>
    %24 = vector.broadcast %23 : vector<1x64xf32> to vector<16x64xf32>
    %25 = arith.addf %22, %24 : vector<16x64xf32>
    %c0_9 = arith.constant 0 : index
    %c0_10 = arith.constant 0 : index
    %26 = vector.load %arg4[%c0_9, %c0_10] : memref<16x64xf32, #tpu.memory_space<vmem>>, vector<16x64xf32>
    tpu.vector_store %arg4[%c0_9, %c0_10], %25 {strides = array<i32>} : memref<16x64xf32, #tpu.memory_space<vmem>>, vector<16x64xf32>,
    return
  }
  func.func @transform_0(%arg0: i32) -> (i32, i32) {
    %c0_i32 = arith.constant 0 : i32
    %c0_i32_0 = arith.constant 0 : i32
    return %arg0, %c0_i32 : i32, i32
  }
  func.func @transform_1(%arg0: i32) -> (i32, i32) {
    %c0_i32 = arith.constant 0 : i32
    %c0_i32_0 = arith.constant 0 : i32
    %c0_i32_1 = arith.constant 0 : i32
    return %c0_i32, %c0_i32_0 : i32, i32
  }
  func.func @transform_2(%arg0: i32) -> (i32, i32) {
    %c0_i32 = arith.constant 0 : i32
    %c0_i32_0 = arith.constant 0 : i32
    %c0_i32_1 = arith.constant 0 : i32
    return %c0_i32, %c0_i32_0 : i32, i32
  }
  func.func @transform_3(%arg0: i32) -> (i32, i32) {
    %c0_i32 = arith.constant 0 : i32
    %c0_i32_0 = arith.constant 0 : i32
    return %arg0, %c0_i32 : i32, i32
  }
}

</mosaic_0001>

<llo_original>
// kernel: gru_model_forward.3
$region0: #{gru_model_forward.3}
  #allocation0 [shape = 'u32[]', space=smem, size = 0x4, offset = 0x4, fixed_abs, tag = 'smem constant byte address 0x4 - core index']
  #allocation1 [shape = 'u32[144,128]{1,0:T(1,128)}', space=vmem, size = 0x12000, scoped, tag = 'internal scratch']
  %s0 = inlined_call_operand.vmem [shape: f32[16,64], index: 0, kind: input, shape index: {}]
  %s1 = inlined_call_operand.vmem [shape: f32[1,64], index: 1, kind: input, shape index: {}]
  %s2 = inlined_call_operand.vmem [shape: f32[1,64], index: 2, kind: input, shape index: {}]
  %s3 = inlined_call_operand.hbm [shape: f32[16,64], index: 3, kind: output, shape index: {}]
  %s4 = sld [smem:[#allocation0]]
  $region22: #{gru_model_forward.3} parent=0
    _
  %s6 = ssub.s32 1, %s4
  %s7 = scalar_select 0, %s6, %s4
  $region1: #{gru_model_forward.3} parent=0
    #allocation2 [shape = 'u8[8192]{0}', space=vmem, size = 0x2000, scoped, tag = 'output window, operand 0, single buffered']
    #allocation3 [shape = 's32[1]{0}', space=sflag, size = 0x4, scoped, tag = 'scoped memory for gru_model_forward.3']
    %8 = vsyncpa [#allocation3], 0
    // Predicated region
    $region2: #{gru_model_forward.3} parent=1 // pred_check
      _
    $region3: #{gru_model_forward.3} parent=1 // pred_check_branch
      %10 = sbr.rel (0) target = $region5
    $region4: #{gru_model_forward.3} parent=1 // pred_region
      _
    $region5: #{gru_model_forward.3} parent=1 // pred_fallthru
      _
    // Predicated region
    $region6: #{gru_model_forward.3} parent=1 // pred_check
      _
    $region7: #{gru_model_forward.3} parent=1 // pred_check_branch
      %12 = sbr.rel (0) target = $region9
    $region8: #{gru_model_forward.3} parent=1 // pred_region
      _
    $region9: #{gru_model_forward.3} parent=1 // pred_fallthru
      _
    // Predicated region
    $region10: #{gru_model_forward.3} parent=1 // pred_check
      _
    $region11: #{gru_model_forward.3} parent=1 // pred_check_branch
      %14 = sbr.rel (0) target = $region13
    $region12: #{gru_model_forward.3} parent=1 // pred_region
      _
    $region13: #{gru_model_forward.3} parent=1 // pred_fallthru
      _
    %v15 = vld [vmem:[%s0] sm:$0xff]
    %v16 = vld [vmem:[%s0 + $0x8] sm:$0xff]
    %vm17 = vcmask 523264
    %v18 = vsel %vm17, %v15, 0.0
    %19 = vadd.xlane.f32.xlu0 %v18
    %v20 = vpop.xlane.xlu0 %19
    %v21 = vsel %vm17, %v16, 0.0
    %22 = vadd.xlane.f32.xlu0 %v21
    %v23 = vpop.xlane.xlu0 %22
    %v24 = vrcp.pop 64.0
    %v25 = vmul.f32 %v20, %v24
    %v26 = vmul.f32 %v23, %v24
    %v27 = vsub.f32 %v15, %v25
    %v28 = vsub.f32 %v16, %v26
    %v29 = vmul.f32 %v27, %v27
    %v30 = vmul.f32 %v28, %v28
    %v31 = vsel %vm17, %v29, 0.0
    %32 = vadd.xlane.f32.xlu0 %v31
    %v33 = vpop.xlane.xlu0 %32
    %v34 = vsel %vm17, %v30, 0.0
    %35 = vadd.xlane.f32.xlu0 %v34
    %v36 = vpop.xlane.xlu0 %35
    %v37 = vmul.f32 %v33, 0.015873017
    %v38 = vmul.f32 %v36, 0.015873017
    %v39 = vrsqrt.pop %v37
    %v40 = vmul.f32 %v37, %v39
    %vm41 = vcmp.eq.f32.partialorder %v37, inf
    %v42 = vsel %vm41, %v37, %v40
    %vm43 = vcmp.eq.f32.partialorder %v37, 0.0
    %v44 = vand.u32 %v37, 2147483648
    %v45 = vsel %vm43, %v44, %v42
    %v46 = vrsqrt.pop %v38
    %v47 = vmul.f32 %v38, %v46
    %vm48 = vcmp.eq.f32.partialorder %v38, inf
    %v49 = vsel %vm48, %v38, %v47
    %vm50 = vcmp.eq.f32.partialorder %v38, 0.0
    %v51 = vand.u32 %v38, 2147483648
    %v52 = vsel %vm50, %v51, %v49
    %v53 = vmax.f32 %v45, 1e-06
    %v54 = vmax.f32 %v52, 1e-06
    %v55 = vrcp.pop %v53
    %v56 = vrcp.pop %v54
    %v57 = vmul.f32 %v27, %v55
    %v58 = vmul.f32 %v28, %v56
    %v59 = vld [vmem:[%s1] sm:$0x1]
    %v61 = vlaneseq
    %v62 = vshrl.u32 %v61, 7
    %v63 = vsub.s32 0, %v62
    %v64 = vrot.slane %v59, %v63
    %v66 = vmul.f32 %v57, %v64
    %v67 = vmul.f32 %v58, %v64
    %v68 = vld [vmem:[%s2] sm:$0x1]
    %v70 = vlaneseq
    %v71 = vshrl.u32 %v70, 7
    %v72 = vsub.s32 0, %v71
    %v73 = vrot.slane %v68, %v72
    %v75 = vadd.f32 %v66, %v73
    %v76 = vadd.f32 %v67, %v73
    %77 = vst.msk [vmem:[#allocation2] sm:$0xff] %vm17, %v75
    %78 = vst.msk [vmem:[#allocation2 + $0x8] sm:$0xff] %vm17, %v76
    // Predicated region
    $region14: #{gru_model_forward.3} parent=1 // pred_check
      _
    $region15: #{gru_model_forward.3} parent=1 // pred_check_branch
      %80 = sbr.rel (0) target = $region17
    $region16: #{gru_model_forward.3} parent=1 // pred_region
      %s82 = ssub.s32 256, 256
      %83 = vsyncadd [#allocation3], %s82
      %s84 = sshll.u32 [#allocation2], 4
      %s85 = int_to_ptr.vmem [resolvable:$true] %s84
      %90 = dma.vmem_to_hbm [thread:$0]  %s85, 256, %s3, [#allocation3], 128, 128, 8
    $region17: #{gru_model_forward.3} parent=1 // pred_fallthru
      _
    // Predicated region
    $region18: #{gru_model_forward.3} parent=1 // pred_check
      _
    $region19: #{gru_model_forward.3} parent=1 // pred_check_branch
      %92 = sbr.rel (0) target = $region21
    $region20: #{gru_model_forward.3} parent=1 // pred_region
      %93 = dma.done [#allocation3], 256
    $region21: #{gru_model_forward.3} parent=1 // pred_fallthru
      _
    %94 = vsyncpa [#allocation3], 1

// kernel: gru_model_forward.2
$region0: #{gru_model_forward.2}
  #allocation0 [shape = 'u32[]', space=smem, size = 0x4, offset = 0x4, fixed_abs, tag = 'smem constant byte address 0x4 - core index']
  #allocation1 [shape = 'u32[144,128]{1,0:T(1,128)}', space=vmem, size = 0x12000, scoped, tag = 'internal scratch']
  #allocation2 [shape = 'f32[8,32]{1,0:T(8,128)}', space=vmem, size = 0x1000, scoped, tag = 'scratch operand']
  %s0 = inlined_call_operand.vmem [shape: f32[2,8,8,96], index: 0, kind: input, shape index: {}]
  %s1 = inlined_call_operand.vmem [shape: f32[2,32,96], index: 1, kind: input, shape index: {}]
  %s2 = inlined_call_operand.vmem [shape: f32[2,1,32], index: 2, kind: input, shape index: {}]
  %s3 = inlined_call_operand.vmem [shape: f32[2,8,8,32], index: 3, kind: output, shape index: {}]
  %s4 = sld [smem:[#allocation0]]
  $region49: #{gru_model_forward.2} parent=0
    _
  %s6 = ssub.s32 1, %s4
  %s7 = scalar_select 0, %s6, %s4
  loop: start=0, step=1, limit=18
  $region2: #{gru_model_forward.2} parent=0 // loop_pre_header
    _
  $region3: #{gru_model_forward.2} parent=0 // loop_header
    %s9 = sphi 0, %s13
    %p10 = scmp.ge.s32.totalorder %s9, 18
    %s16 = sphi 0, %s28
    %s17 = sphi 0, %s24
    %s18 = sphi 0, %s16
    %s19 = sphi 0, %s17
    %s20 = sphi 0, %s18
    %s21 = sphi 0, %s19
    %s41 = sphi 0, %s43
    %s44 = sphi 0, %s41
    %s45 = sphi 0, %s44
    %s61 = sphi 0, %s45
    %s67 = sphi 0, %s69
    %s70 = sphi 0, %s67
    %s71 = sphi 0, %s70
    %s87 = sphi 0, %s71
    %s93 = sphi 0, %s95
    %s96 = sphi 0, %s93
    %s97 = sphi 0, %s96
    %s113 = sphi 0, %s97
    %s119 = sphi 0, %s121
    %s122 = sphi 0, %s119
    %s123 = sphi 0, %s122
    %s139 = sphi 0, %s123
  $region4: #{gru_model_forward.2} parent=0 // loop_header_branch
    %12 = sbr.rel (%p10) target = $region8
  $region5: #{gru_model_forward.2} parent=0 // loop_body
    %s14 = ssub.s32 %s9, 1
    %s15 = ssub.s32 %s9, 2
    %s22 = sadd.s32 1, %s17
    %p23 = scmp.ge.s32.totalorder %s22, 8
    %s24 = scalar_select %p23, 0, %s22
    %s25 = sadd.s32 1, %s16
    %s26 = scalar_select %p23, %s25, %s16
    %p27 = scmp.ge.s32.totalorder %s26, 2
    %s28 = scalar_select %p27, 0, %s26
    %s29 = smul.u32 %s17, 2
    %s30 = ssub.s32 7, %s29
    %s31 = smul.u32 %s16, %s30
    %s32 = sadd.s32 %s17, %s31
    %s33 = smul.u32 %s24, 2
    %s34 = ssub.s32 7, %s33
    %s35 = smul.u32 %s28, %s34
    %s36 = sadd.s32 %s24, %s35
    %s37 = ssub.s32 %s16, %s28
    %s38 = ssub.s32 %s32, %s36
    %s39 = sor.u32 %s37, %s38
    %p40 = scmp.eq.s32.totalorder %s39, 0
    %s42 = sadd.s32 %s41, 1
    %s43 = scalar_select %p40, %s41, %s42
    %p46 = pneg %p40
    %p47 = scmp.eq.s32.totalorder %s9, 15
    %p48 = por %p46, %p47
    %p49 = scmp.ne.s32.totalorder %s41, %s44
    %p50 = scmp.eq.s32.totalorder %s9, 0
    %p51 = por %p49, %p50
    %p52 = scmp.ne.s32.totalorder %s41, %s44
    %p53 = scmp.eq.s32.totalorder %s14, 15
    %p54 = por %p52, %p53
    %p55 = scmp.ne.s32.totalorder %s44, %s45
    %p56 = scmp.eq.s32.totalorder %s14, 0
    %p57 = por %p55, %p56
    %p58 = scmp.ne.s32.totalorder %s44, %s45
    %p59 = scmp.eq.s32.totalorder %s15, 15
    %p60 = por %p58, %p59
    %p62 = scmp.ne.s32.totalorder %s45, %s61
    %p63 = scmp.eq.s32.totalorder %s15, 0
    %p64 = por %p62, %p63
    %s65 = ssub.s32 %s16, %s28
    %p66 = scmp.eq.s32.totalorder %s65, 0
    %s68 = sadd.s32 %s67, 1
    %s69 = scalar_select %p66, %s67, %s68
    %p72 = pneg %p66
    %p73 = scmp.eq.s32.totalorder %s9, 15
    %p74 = por %p72, %p73
    %p75 = scmp.ne.s32.totalorder %s67, %s70
    %p76 = scmp.eq.s32.totalorder %s9, 0
    %p77 = por %p75, %p76
    %p78 = scmp.ne.s32.totalorder %s67, %s70
    %p79 = scmp.eq.s32.totalorder %s14, 15
    %p80 = por %p78, %p79
    %p81 = scmp.ne.s32.totalorder %s70, %s71
    %p82 = scmp.eq.s32.totalorder %s14, 0
    %p83 = por %p81, %p82
    %p84 = scmp.ne.s32.totalorder %s70, %s71
    %p85 = scmp.eq.s32.totalorder %s15, 15
    %p86 = por %p84, %p85
    %p88 = scmp.ne.s32.totalorder %s71, %s87
    %p89 = scmp.eq.s32.totalorder %s15, 0
    %p90 = por %p88, %p89
    %s91 = ssub.s32 %s16, %s28
    %p92 = scmp.eq.s32.totalorder %s91, 0
    %s94 = sadd.s32 %s93, 1
    %s95 = scalar_select %p92, %s93, %s94
    %p98 = pneg %p92
    %p99 = scmp.eq.s32.totalorder %s9, 15
    %p100 = por %p98, %p99
    %p101 = scmp.ne.s32.totalorder %s93, %s96
    %p102 = scmp.eq.s32.totalorder %s9, 0
    %p103 = por %p101, %p102
    %p104 = scmp.ne.s32.totalorder %s93, %s96
    %p105 = scmp.eq.s32.totalorder %s14, 15
    %p106 = por %p104, %p105
    %p107 = scmp.ne.s32.totalorder %s96, %s97
    %p108 = scmp.eq.s32.totalorder %s14, 0
    %p109 = por %p107, %p108
    %p110 = scmp.ne.s32.totalorder %s96, %s97
    %p111 = scmp.eq.s32.totalorder %s15, 15
    %p112 = por %p110, %p111
    %p114 = scmp.ne.s32.totalorder %s97, %s113
    %p115 = scmp.eq.s32.totalorder %s15, 0
    %p116 = por %p114, %p115
    %s117 = ssub.s32 %s16, %s28
    %p118 = scmp.eq.s32.totalorder %s117, 0
    %s120 = sadd.s32 %s119, 1
    %s121 = scalar_select %p118, %s119, %s120
    %p124 = pneg %p118
    %p125 = scmp.eq.s32.totalorder %s9, 15
    %p126 = por %p124, %p125
    %p127 = scmp.ne.s32.totalorder %s119, %s122
    %p128 = scmp.eq.s32.totalorder %s9, 0
    %p129 = por %p127, %p128
    %p130 = scmp.ne.s32.totalorder %s119, %s122
    %p131 = scmp.eq.s32.totalorder %s14, 15
    %p132 = por %p130, %p131
    %p133 = scmp.ne.s32.totalorder %s122, %s123
    %p134 = scmp.eq.s32.totalorder %s14, 0
    %p135 = por %p133, %p134
    %p136 = scmp.ne.s32.totalorder %s122, %s123
    %p137 = scmp.eq.s32.totalorder %s15, 15
    %p138 = por %p136, %p137
    %p140 = scmp.ne.s32.totalorder %s123, %s139
    %p141 = scmp.eq.s32.totalorder %s15, 0
    %p142 = por %p140, %p141
    %p143 = scmp.le.s32.totalorder 1, %s9
    %p144 = scmp.lt.s32.totalorder %s9, 17
    %p145 = pnand %p143, %p144
    %p146 = pneg %p145
    // Predicated region
    $region9: #{gru_model_forward.2} parent=5 // pred_check
      _
    $region10: #{gru_model_forward.2} parent=5 // pred_check_branch
      %148 = sbr.rel (%p145) target = $region12
    $region11: #{gru_model_forward.2} parent=5 // pred_region
      %s149 = ssub.s32 %s9, 1
    $region12: #{gru_model_forward.2} parent=5 // pred_fallthru
      _
    %p150 = scmp.lt.s32.totalorder %s9, 16
    // Predicated region
    $region13: #{gru_model_forward.2} parent=5 // pred_check
      %p151 = pneg %p150
    $region14: #{gru_model_forward.2} parent=5 // pred_check_branch
      %153 = sbr.rel (%p151) target = $region16
    $region15: #{gru_model_forward.2} parent=5 // pred_region
      // Predicated region
      $region17: #{gru_model_forward.2} parent=15 // pred_check
        %p154 = pneg %p51
      $region18: #{gru_model_forward.2} parent=15 // pred_check_branch
        %156 = sbr.rel (%p154) target = $region20
      $region19: #{gru_model_forward.2} parent=15 // pred_region
        %s157 = smul.u32 %s17, 2
        %s158 = ssub.s32 7, %s157
        %s159 = smul.u32 %s16, %s158
        %s160 = sadd.s32 %s17, %s159
        %p161 = scmp.lt.s32.totalorder %s16, 1
        %s162 = scalar_select %p161, %s16, 1
        %p163 = scmp.lt.s32.totalorder %s160, 7
        %s164 = scalar_select %p163, %s160, 7
        %s165 = smul.addr %s162, 8
        %s166 = sadd.s32 %s164, %s165
        %s167 = smul.addr %s166, 8
        %s168 = scalar_lea.vmem %s0, %s167
        %s169 = smul.u32 %s17, 2
        %s170 = ssub.s32 7, %s169
        %s171 = smul.u32 %s16, %s170
        %s172 = sadd.s32 %s17, %s171
      $region20: #{gru_model_forward.2} parent=15 // pred_fallthru
        _
      // Predicated region
      $region21: #{gru_model_forward.2} parent=15 // pred_check
        %p173 = pneg %p77
      $region22: #{gru_model_forward.2} parent=15 // pred_check_branch
        %175 = sbr.rel (%p173) target = $region24
      $region23: #{gru_model_forward.2} parent=15 // pred_region
        %p176 = scmp.lt.s32.totalorder %s16, 1
        %s177 = scalar_select %p176, %s16, 1
        %s178 = smul.addr %s177, 4
        %s179 = smul.addr %s178, 8
        %s180 = scalar_lea.vmem %s1, %s179
      $region24: #{gru_model_forward.2} parent=15 // pred_fallthru
        _
      // Predicated region
      $region25: #{gru_model_forward.2} parent=15 // pred_check
        %p181 = pneg %p103
      $region26: #{gru_model_forward.2} parent=15 // pred_check_branch
        %183 = sbr.rel (%p181) target = $region28
      $region27: #{gru_model_forward.2} parent=15 // pred_region
        %p184 = scmp.lt.s32.totalorder %s16, 1
        %s185 = scalar_select %p184, %s16, 1
        %s186 = scalar_lea.vmem %s2, %s185
      $region28: #{gru_model_forward.2} parent=15 // pred_fallthru
        _
    $region16: #{gru_model_forward.2} parent=5 // pred_fallthru
      _
    %p187 = scmp.le.s32.totalorder 1, %s9
    %p188 = scmp.lt.s32.totalorder %s9, 17
    %p189 = pnand %p187, %p188
    %p190 = pneg %p189
    // Predicated region
    $region29: #{gru_model_forward.2} parent=5 // pred_check
      _
    $region30: #{gru_model_forward.2} parent=5 // pred_check_branch
      %192 = sbr.rel (%p189) target = $region32
    $region31: #{gru_model_forward.2} parent=5 // pred_region
      %s193 = ssub.s32 %s9, 1
      %s194 = smul.u32 %s19, 2
      %s195 = ssub.s32 7, %s194
      %s196 = smul.u32 %s18, %s195
      %s197 = sadd.s32 %s19, %s196
      %p198 = scmp.lt.s32.totalorder %s18, 1
      %s199 = scalar_select %p198, %s18, 1
      %p200 = scmp.lt.s32.totalorder %s197, 7
      %s201 = scalar_select %p200, %s197, 7
      %s202 = smul.addr %s199, 8
      %s203 = sadd.s32 %s201, %s202
      %s204 = smul.addr %s203, 8
      %s205 = scalar_lea.vmem %s0, %s204
      %p206 = pneg %p57
      %p207 = pneg %p54
      %p208 = scmp.lt.s32.totalorder %s18, 1
      %s209 = scalar_select %p208, %s18, 1
      %s210 = smul.addr %s209, 4
      %s211 = smul.addr %s210, 8
      %s212 = scalar_lea.vmem %s1, %s211
      %p213 = pneg %p83
      %p214 = pneg %p80
      %p215 = scmp.lt.s32.totalorder %s18, 1
      %s216 = scalar_select %p215, %s18, 1
      %s217 = scalar_lea.vmem %s2, %s216
      %p218 = pneg %p109
      %p219 = pneg %p106
      %p220 = pneg %p135
      %p221 = pneg %p132
      %p222 = scmp.lt.s32.totalorder %s18, 1
      %s223 = scalar_select %p222, %s18, 1
      %s224 = smul.addr %s223, 8
      %s225 = smul.addr %s224, 8
      %s226 = scalar_lea.vmem %s3, %s225
      %s227 = smul.u32 %s19, 2
      %s228 = ssub.s32 7, %s227
      %s229 = smul.u32 %s18, %s228
      %s230 = sadd.s32 %s19, %s229
      %p231 = scmp.lt.s32.totalorder %s18, 1
      %s232 = scalar_select %p231, %s18, 1
      %p233 = scmp.lt.s32.totalorder %s230, 7
      %s234 = scalar_select %p233, %s230, 7
      %s235 = smul.addr %s232, 8
      %s236 = sadd.s32 %s234, %s235
      %s237 = smul.addr %s236, 8
      %s238 = scalar_lea.vmem %s0, %s237
      %s239 = smul.u32 %s19, 2
      %s240 = ssub.s32 7, %s239
      %s241 = smul.u32 %s18, %s240
      %s242 = sadd.s32 %s19, %s241
      %p243 = scmp.lt.s32.totalorder %s18, 1
      %s244 = scalar_select %p243, %s18, 1
      %s245 = smul.addr %s244, 4
      %s246 = smul.addr %s245, 8
      %s247 = scalar_lea.vmem %s1, %s246
      %p248 = scmp.lt.s32.totalorder %s18, 1
      %s249 = scalar_select %p248, %s18, 1
      %s250 = scalar_lea.vmem %s2, %s249
      %p251 = scmp.lt.s32.totalorder %s18, 1
      %s252 = scalar_select %p251, %s18, 1
      %s253 = smul.addr %s252, 8
      %s254 = smul.addr %s253, 8
      %s255 = scalar_lea.vmem %s3, %s254
      %p256 = scmp.eq.s32.totalorder %s19, 0
      // Predicated region
      $region33: #{gru_model_forward.2} parent=31 // pred_check
        %p257 = pneg %p256
      $region34: #{gru_model_forward.2} parent=31 // pred_check_branch
        %259 = sbr.rel (%p257) target = $region36
      $region35: #{gru_model_forward.2} parent=31 // pred_region
        %vm260 = vcmask 261120
        %261 = vst.msk [vmem:[#allocation2] sm:$0xff] %vm260, 0.0
      $region36: #{gru_model_forward.2} parent=31 // pred_fallthru
        _
      %v262 = vld [vmem:[%s238] sm:$0xff]
      %v263 = vld [vmem:[#allocation2] sm:$0xff]
      %v264 = vld [vmem:[%s247] sm:$0xff]
      %v265 = vld [vmem:[%s247 + $0x8] sm:$0xff]
      %v266 = vld [vmem:[%s247 + $0x10] sm:$0xff]
      %v267 = vld [vmem:[%s247 + $0x18] sm:$0xff]
      %vm268 = vcmask 261120
      %v270 = vsel %vm268, %v263, 0
      %272 = vmatprep.subr.mxu0 0.0
      %273 = vmatpush1.msra.mxu0 %v264
      %274 = vmatprep.subr.mxu0 0.0
      %275 = vmatpush1.msra.mxu0 %v265
      %276 = vmatprep.subr.mxu0 0.0
      %277 = vmatpush1.msra.mxu0 %v266
      %278 = vmatprep.subr.mxu0 0.0
      %279 = vmatpush1.msra.mxu0 %v267
      %280 = vmatprep.subr.mxu0 0.0
      %281 = vmatpush1.msra.mxu0 0.0
      %282 = vmatprep.subr.mxu0 0.0
      %283 = vmatpush1.msra.mxu0 0.0
      %284 = vmatprep.subr.mxu0 0.0
      %285 = vmatpush1.msra.mxu0 0.0
      %286 = vmatprep.subr.mxu0 0.0
      %287 = vmatpush1.msra.mxu0 0.0
      %288 = vmatprep.subr.mxu0 0.0
      %289 = vmatpush1.msra.mxu0 0.0
      %290 = vmatprep.subr.mxu0 0.0
      %291 = vmatpush1.msra.mxu0 0.0
      %292 = vmatprep.subr.mxu0 0.0
      %293 = vmatpush1.msra.mxu0 0.0
      %294 = vmatprep.subr.mxu0 0.0
      %295 = vmatpush1.msra.mxu0 0.0
      %296 = vmatprep.subr.mxu0 0.0
      %297 = vmatpush1.msra.mxu0 0.0
      %298 = vmatprep.subr.mxu0 0.0
      %299 = vmatpush1.msra.mxu0 0.0
      %300 = vmatprep.subr.mxu0 0.0
      %301 = vmatpush1.msra.mxu0 0.0
      %302 = vmatprep.subr.mxu0 0.0
      %303 = vmatpush1.msra.mxu0 0.0
      %304 = vmatprep.subr.mxu0 0.0
      %305 = vmatpush1.msra.mxu0 0.0
      %306 = vmatprep.subr.mxu0 0.0
      %307 = vmatpush1.msra.mxu0 0.0
      %308 = vmatprep.subr.mxu0 0.0
      %309 = vmatpush1.msra.mxu0 0.0
      %310 = vmatprep.subr.mxu0 0.0
      %311 = vmatpush1.msra.mxu0 0.0
      %312 = vmatprep.subr.mxu0 0.0
      %313 = vmatpush1.msra.mxu0 0.0
      %314 = vmatprep.subr.mxu0 0.0
      %315 = vmatpush1.msra.mxu0 0.0
      %316 = vmatprep.subr.mxu0 0.0
      %317 = vmatpush1.msra.mxu0 0.0
      %318 = vmatprep.subr.mxu0 0.0
      %319 = vmatpush1.msra.mxu0 0.0
      %320 = vmatprep.subr.mxu0 0.0
      %321 = vmatpush1.msra.mxu0 0.0
      %322 = vmatprep.subr.mxu0 0.0
      %323 = vmatpush1.msra.mxu0 0.0
      %324 = vmatprep.subr.mxu0 0.0
      %325 = vmatpush1.msra.mxu0 0.0
      %326 = vmatprep.subr.mxu0 0.0
      %327 = vmatpush1.msra.mxu0 0.0
      %328 = vmatprep.subr.mxu0 0.0
      %329 = vmatpush1.msra.mxu0 0.0
      %330 = vmatprep.subr.mxu0 0.0
      %331 = vmatpush1.msra.mxu0 0.0
      %332 = vmatprep.subr.mxu0 0.0
      %333 = vmatpush1.msra.mxu0 0.0
      %334 = vmatprep.subr.mxu0 0.0
      %335 = vmatpush1.msra.mxu0 0.0
      %336 = vmatprep.mubr.f32.mxu0 0.0
      %337 = vmatmul.mubr.f32.gmra.mrb[0].mxu0 %v270
      %v338 = vpop.f32.mrb[0].mxu0
      %v339 = vadd.f32 0.0, %v338
      %v340 = vpop.f32.mrb[0].mxu0
      %341 = vdwg.mxu0
      %v342 = vadd.f32 %v262, %v339
      %v343 = vxor.u32 %v342, 2147483648
      %v344 = vmul.f32 %v343, 1.442695
      %v345 = vpow.pop %v344
      %v346 = vadd.f32 %v345, 1.0
      %v347 = vrcp.pop %v346
      %v348 = vmul.f32 1.0, %v347
      %v349 = vld [vmem:[%s250] sm:$0x1]
      %v351 = vlaneseq
      %v352 = vshrl.u32 %v351, 7
      %v353 = vsub.s32 0, %v352
      %v354 = vrot.slane %v349, %v353
      %355 = vrot.lane.b32.xlu0 %v354, 64
      %v356 = vpop.permute.xlu0 %355
      %v358 = vadd.f32 %v339, %v356
      %360 = vrot.lane.b32.xlu0 %v358, 64
      %v361 = vpop.permute.xlu0 %360
      %v363 = vmul.f32 %v348, %v361
      %365 = vrot.lane.b32.xlu0 %v363, 64
      %v366 = vpop.permute.xlu0 %365
      %v368 = vadd.f32 %v262, %v366
      %v369 = vtanh.pop %v368
      %v370 = vsub.f32 1.0, %v348
      %372 = vrot.lane.b32.xlu0 %v369, 96
      %v373 = vpop.permute.xlu0 %372
      %v375 = vmul.f32 %v370, %v373
      %376 = vrot.lane.b32.xlu0 %v263, 32
      %v377 = vpop.permute.xlu0 %376
      %v379 = vmul.f32 %v348, %v377
      %v380 = vadd.f32 %v375, %v379
      %382 = vrot.lane.b32.xlu0 %v380, 96
      %v383 = vpop.permute.xlu0 %382
      %385 = vst.msk [vmem:[#allocation2] sm:$0xff] %vm268, %v383
      %s386 = smul.u32 %s19, 2
      %s387 = ssub.s32 7, %s386
      %s388 = smul.u32 %s18, %s387
      %s389 = sadd.s32 %s19, %s388
      %s390 = smul.u32 %s389, 8
      %s391 = scalar_lea.vmem %s255, %s390
      %392 = vst.msk [vmem:[%s391] sm:$0xff] %vm268, %v383
      %p393 = scmp.lt.s32.totalorder %s18, 1
      %s394 = scalar_select %p393, %s18, 1
      %s395 = smul.addr %s394, 8
      %s396 = smul.addr %s395, 8
      %s397 = scalar_lea.vmem %s3, %s396
      // Predicated region
      $region37: #{gru_model_forward.2} parent=31 // pred_check
        %p398 = pneg %p132
      $region38: #{gru_model_forward.2} parent=31 // pred_check_branch
        %400 = sbr.rel (%p398) target = $region40
      $region39: #{gru_model_forward.2} parent=31 // pred_region
        _
      $region40: #{gru_model_forward.2} parent=31 // pred_fallthru
        _
    $region32: #{gru_model_forward.2} parent=5 // pred_fallthru
      _
    %p401 = scmp.le.s32.totalorder 2, %s9
    // Predicated region
    $region41: #{gru_model_forward.2} parent=5 // pred_check
      %p402 = pneg %p401
    $region42: #{gru_model_forward.2} parent=5 // pred_check_branch
      %404 = sbr.rel (%p402) target = $region44
    $region43: #{gru_model_forward.2} parent=5 // pred_region
      %s405 = ssub.s32 %s9, 2
      // Predicated region
      $region45: #{gru_model_forward.2} parent=43 // pred_check
        %p406 = pneg %p138
      $region46: #{gru_model_forward.2} parent=43 // pred_check_branch
        %408 = sbr.rel (%p406) target = $region48
      $region47: #{gru_model_forward.2} parent=43 // pred_region
        %p409 = scmp.lt.s32.totalorder %s20, 1
        %s410 = scalar_select %p409, %s20, 1
        %s411 = smul.addr %s410, 8
        %s412 = smul.addr %s411, 8
        %s413 = scalar_lea.vmem %s3, %s412
      $region48: #{gru_model_forward.2} parent=43 // pred_fallthru
        _
    $region44: #{gru_model_forward.2} parent=5 // pred_fallthru
      _
  $region6: #{gru_model_forward.2} parent=0 // loop_footer
    %s13 = sadd.s32 1, %s9
  $region7: #{gru_model_forward.2} parent=0 // loop_footer_branch
    %8 = sbr.rel target = $region3
  $region8: #{gru_model_forward.2} parent=0 // loop_exit
    _

</llo_original>
